<compile_context>
chip_gen: v7x
topology: tpu7x:2x2x1
jax: 0.10.0
libtpu: 0.0.40
codegen_flags: <defaults>
</compile_context>

<pallas_src>
import math
import jax
import jax.numpy as jnp
from jax import lax
from jax.experimental import pallas as pl
from jax.experimental.pallas import tpu as pltpu


def _pick_tile(n, target):
    """Largest tile <= target that divides n and is a multiple of 8 (or == n)."""
    t = min(n, target)
    while t > 1 and (n % t != 0 or (t % 8 != 0 and t != n)):
        t -= 1
    return max(t, 1)


# --------------------------------------------------------------------------
# Kernel 1: batched linear projections (weights already transposed + scaled).
# --------------------------------------------------------------------------
def _proj_kernel(q_ref, k_ref, v_ref,
                 wqt_ref, bq_ref, wkt_ref, bk_ref, wvt_ref, bv_ref,
                 qp_ref, kp_ref, vp_ref):
    # x: (tm, D_in), w: (D_in, d)  ->  (tm, d).  No transposes in-kernel.
    qp_ref[...] = (jnp.dot(q_ref[...], wqt_ref[...],
                           preferred_element_type=jnp.float32)
                   + bq_ref[...]).astype(qp_ref.dtype)
    kp_ref[...] = (jnp.dot(k_ref[...], wkt_ref[...],
                           preferred_element_type=jnp.float32)
                   + bk_ref[...]).astype(kp_ref.dtype)
    vp_ref[...] = (jnp.dot(v_ref[...], wvt_ref[...],
                           preferred_element_type=jnp.float32)
                   + bv_ref[...]).astype(vp_ref.dtype)


# --------------------------------------------------------------------------
# Kernel 2: flash-style attention with online softmax over KV tiles.
# --------------------------------------------------------------------------
def _flash_attn_kernel(q_ref, k_ref, v_ref, o_ref, m_sc, l_sc, acc_sc):
    ki = pl.program_id(2)

    @pl.when(ki == 0)
    def _():
        m_sc[...] = jnp.full_like(m_sc, -jnp.inf)
        l_sc[...] = jnp.zeros_like(l_sc)
        acc_sc[...] = jnp.zeros_like(acc_sc)

    q = q_ref[0]            # (tq, dq)  -- already pre-scaled by 1/sqrt(dq)
    k = k_ref[0]            # (tk, dk)
    v = v_ref[0]            # (tk, dv)

    # Q @ K^T without an explicit transpose: contract the last dim of both.
    s = lax.dot_general(q, k, dimension_numbers=(((1,), (1,)), ((), ())),
                        preferred_element_type=jnp.float32)      # (tq, tk)

    # TODO(synk): optional `mask` argument (masked_fill with -inf) not wired
    # through; this implements the forward() default (mask=None) path.

    m_prev = m_sc[...]
    m_new = jnp.maximum(m_prev, jnp.max(s, axis=-1, keepdims=True))
    alpha = jnp.exp(m_prev - m_new)
    p = jnp.exp(s - m_new)                                        # (tq, tk)

    l_sc[...] = alpha * l_sc[...] + jnp.sum(p, axis=-1, keepdims=True)
    acc_sc[...] = alpha * acc_sc[...] + jnp.dot(
        p.astype(v.dtype), v, preferred_element_type=jnp.float32)
    m_sc[...] = m_new

    @pl.when(ki == pl.num_programs(2) - 1)
    def _():
        o_ref[0] = (acc_sc[...] *
                    pl.reciprocal(l_sc[...], approx=True)).astype(o_ref.dtype)


# --------------------------------------------------------------------------
# Wrapper
# --------------------------------------------------------------------------
def attention_head(q, k, v, wq, bq, wk, bk, wv, bv,
                   *, row_tile=512, q_tile=128, kv_tile=128):
    """q, k, v: (B, S, D_in).  Weights follow nn.Linear ((out, in)).  Returns (B, S, dim_k)."""
    B, S, D_in = q.shape
    dq = wq.shape[0]
    dk = wk.shape[0]
    dv = wv.shape[0]
    assert dq == dk, "Q @ K^T requires dim_q == dim_k"

    # Host-side prep: pre-transpose weights to (D_in, d) and fold the
    # 1/sqrt(d_q) scale into Wq / bq (identical math, zero in-kernel cost).
    scale = 1.0 / math.sqrt(dq)
    wqt = (wq.T * scale).astype(q.dtype)
    bq2 = (bq * scale).reshape(1, dq).astype(q.dtype)
    wkt = wk.T.astype(q.dtype)
    bk2 = bk.reshape(1, dk).astype(q.dtype)
    wvt = wv.T.astype(q.dtype)
    bv2 = bv.reshape(1, dv).astype(q.dtype)

    # ---- 1) Projections over all B*S rows at once ------------------------
    BS = B * S
    q2 = q.reshape(BS, D_in)
    k2 = k.reshape(BS, D_in)
    v2 = v.reshape(BS, D_in)
    tm = _pick_tile(BS, row_tile)

    qp, kp, vp = pl.pallas_call(
        _proj_kernel,
        out_shape=(jax.ShapeDtypeStruct((BS, dq), q.dtype),
                   jax.ShapeDtypeStruct((BS, dk), q.dtype),
                   jax.ShapeDtypeStruct((BS, dv), q.dtype)),
        grid_spec=pltpu.PrefetchScalarGridSpec(
            num_scalar_prefetch=0,
            grid=(BS // tm,),
            in_specs=[
                pl.BlockSpec((tm, D_in), lambda i: (i, 0)),   # q rows
                pl.BlockSpec((tm, D_in), lambda i: (i, 0)),   # k rows
                pl.BlockSpec((tm, D_in), lambda i: (i, 0)),   # v rows
                pl.BlockSpec((D_in, dq), lambda i: (0, 0)),   # Wq^T (pre-scaled)
                pl.BlockSpec((1, dq),    lambda i: (0, 0)),   # bq   (pre-scaled)
                pl.BlockSpec((D_in, dk), lambda i: (0, 0)),   # Wk^T
                pl.BlockSpec((1, dk),    lambda i: (0, 0)),   # bk
                pl.BlockSpec((D_in, dv), lambda i: (0, 0)),   # Wv^T
                pl.BlockSpec((1, dv),    lambda i: (0, 0)),   # bv
            ],
            out_specs=(
                pl.BlockSpec((tm, dq), lambda i: (i, 0)),
                pl.BlockSpec((tm, dk), lambda i: (i, 0)),
                pl.BlockSpec((tm, dv), lambda i: (i, 0)),
            ),
        ),
        compiler_params=pltpu.CompilerParams(
            dimension_semantics=("parallel",)),
    )(q2, k2, v2, wqt, bq2, wkt, bk2, wvt, bv2)

    qp = qp.reshape(B, S, dq)
    kp = kp.reshape(B, S, dk)
    vp = vp.reshape(B, S, dv)

    # ---- 2) Flash-style attention, tiled over (B, q-tiles, kv-tiles) -----
    tq = _pick_tile(S, q_tile)
    tk = _pick_tile(S, kv_tile)

    out = pl.pallas_call(
        _flash_attn_kernel,
        out_shape=jax.ShapeDtypeStruct((B, S, dv), q.dtype),
        grid_spec=pltpu.PrefetchScalarGridSpec(
            num_scalar_prefetch=0,
            grid=(B, S // tq, S // tk),
            in_specs=[
                pl.BlockSpec((1, tq, dq), lambda b, qi, ki: (b, qi, 0)),
                pl.BlockSpec((1, tk, dk), lambda b, qi, ki: (b, ki, 0)),
                pl.BlockSpec((1, tk, dv), lambda b, qi, ki: (b, ki, 0)),
            ],
            out_specs=pl.BlockSpec((1, tq, dv), lambda b, qi, ki: (b, qi, 0)),
            scratch_shapes=[
                pltpu.VMEM((tq, 1), jnp.float32),    # running max m
                pltpu.VMEM((tq, 1), jnp.float32),    # running denom l
                pltpu.VMEM((tq, dv), jnp.float32),   # output accumulator
            ],
        ),
        compiler_params=pltpu.CompilerParams(
            dimension_semantics=("parallel", "parallel", "arbitrary")),
    )(qp, kp, vp)

    return out


if __name__ == "__main__":
    # Small, deterministic example consistent with AttentionHead(dim_input, dim_q, dim_k)
    B, S, D_in = 2, 8, 32
    dim_q = dim_k = 16

    key = jax.random.PRNGKey(0)
    kq, kk, kv, k1, k2, k3, k4, k5, k6 = jax.random.split(key, 9)

    q = jax.random.normal(kq, (B, S, D_in), dtype=jnp.float32)
    k = jax.random.normal(kk, (B, S, D_in), dtype=jnp.float32)
    v = jax.random.normal(kv, (B, S, D_in), dtype=jnp.float32)

    # Deterministic parameter init (nn.Linear shapes: weight (out, in), bias (out,))
    wq = jax.random.normal(k1, (dim_q, D_in), dtype=jnp.float32) * (1.0 / math.sqrt(D_in))
    bq = jax.random.normal(k2, (dim_q,), dtype=jnp.float32) * 0.01
    wk = jax.random.normal(k3, (dim_k, D_in), dtype=jnp.float32) * (1.0 / math.sqrt(D_in))
    bk = jax.random.normal(k4, (dim_k,), dtype=jnp.float32) * 0.01
    wv = jax.random.normal(k5, (dim_k, D_in), dtype=jnp.float32) * (1.0 / math.sqrt(D_in))
    bv = jax.random.normal(k6, (dim_k,), dtype=jnp.float32) * 0.01

    out = attention_head(q, k, v, wq, bq, wk, bk, wv, bv)
    jax.block_until_ready(out)

    # Cross-check against a pure-JAX reference of the PyTorch forward.
    def ref(q, k, v):
        qp = q @ wq.T + bq
        kp = k @ wk.T + bk
        vp = v @ wv.T + bv
        logits = jnp.einsum("bsd,btd->bst", qp, kp) / math.sqrt(dim_q)
        attn = jax.nn.softmax(logits, axis=-1)
        return jnp.einsum("bst,btd->bsd", attn, vp)

    expected = ref(q, k, v)
    assert out.shape == (B, S, dim_k)
    # Tolerance loosened slightly: pl.reciprocal(approx=True) uses the EUP's
    # approximate reciprocal for the softmax denominator.
    assert jnp.allclose(out, expected, atol=1e-2, rtol=1e-2), "mismatch vs reference"

    print("KERNEL_OK")
</pallas_src>

<mosaic_0001>
module attributes {stable_mosaic.version = 11 : i64} {
  func.func @_proj_kernel(%arg0: i32, %arg1: memref<16x32xf32, #tpu.memory_space<vmem>>, %arg2: memref<16x32xf32, #tpu.memory_space<vmem>>, %arg3: memref<16x32xf32, #tpu.memory_space<vmem>>, %arg4: memref<32x16xf32, #tpu.memory_space<vmem>>, %arg5: memref<1x16xf32, #tpu.memory_space<vmem>>, %arg6: memref<32x16xf32, #tpu.memory_space<vmem>>, %arg7: memref<1x16xf32, #tpu.memory_space<vmem>>, %arg8: memref<32x16xf32, #tpu.memory_space<vmem>>, %arg9: memref<1x16xf32, #tpu.memory_space<vmem>>, %arg10: memref<16x16xf32, #tpu.memory_space<vmem>>, %arg11: memref<16x16xf32, #tpu.memory_space<vmem>>, %arg12: memref<16x16xf32, #tpu.memory_space<vmem>>) attributes {dimension_semantics = [#tpu.dimension_semantics<parallel>], iteration_bounds = array<i64: 1>, scalar_prefetch = 0 : i64, scratch_operands = 0 : i64, tpu.core_type = #tpu.core_type<tc>, window_params = [{transform_indices = @transform_0, window_bounds = array<i64: 16, 32>}, {transform_indices = @transform_1, window_bounds = array<i64: 16, 32>}, {transform_indices = @transform_2, window_bounds = array<i64: 16, 32>}, {pipeline_mode = #tpu.pipeline_mode<synchronous>, transform_indices = @transform_3, window_bounds = array<i64: 32, 16>}, {pipeline_mode = #tpu.pipeline_mode<synchronous>, transform_indices = @transform_4, window_bounds = array<i64: 1, 16>}, {pipeline_mode = #tpu.pipeline_mode<synchronous>, transform_indices = @transform_5, window_bounds = array<i64: 32, 16>}, {pipeline_mode = #tpu.pipeline_mode<synchronous>, transform_indices = @transform_6, window_bounds = array<i64: 1, 16>}, {pipeline_mode = #tpu.pipeline_mode<synchronous>, transform_indices = @transform_7, window_bounds = array<i64: 32, 16>}, {pipeline_mode = #tpu.pipeline_mode<synchronous>, transform_indices = @transform_8, window_bounds = array<i64: 1, 16>}, {transform_indices = @transform_9, window_bounds = array<i64: 16, 16>}, {transform_indices = @transform_10, window_bounds = array<i64: 16, 16>}, {transform_indices = @transform_11, window_bounds = array<i64: 16, 16>}]} {
    %c0 = arith.constant 0 : index
    %c0_0 = arith.constant 0 : index
    %0 = vector.load %arg1[%c0, %c0_0] : memref<16x32xf32, #tpu.memory_space<vmem>>, vector<16x32xf32>
    %c0_1 = arith.constant 0 : index
    %c0_2 = arith.constant 0 : index
    %1 = vector.load %arg4[%c0_1, %c0_2] : memref<32x16xf32, #tpu.memory_space<vmem>>, vector<32x16xf32>
    %cst = arith.constant dense<0.000000e+00> : vector<16x16xf32>
    %2 = tpu.matmul %0, %1, %cst {dimension_numbers = #tpu.dot_dimension_numbers<[1], [0], [0], [1], [0, 0, 1, 1], [], []>} : vector<16x32xf32>, vector<32x16xf32>, vector<16x16xf32> -> vector<16x16xf32>
    %c0_3 = arith.constant 0 : index
    %c0_4 = arith.constant 0 : index
    %3 = vector.load %arg5[%c0_3, %c0_4] : memref<1x16xf32, #tpu.memory_space<vmem>>, vector<1x16xf32>
    %4 = vector.broadcast %3 : vector<1x16xf32> to vector<16x16xf32>
    %5 = arith.addf %2, %4 : vector<16x16xf32>
    %c0_5 = arith.constant 0 : index
    %c0_6 = arith.constant 0 : index
    %6 = vector.load %arg10[%c0_5, %c0_6] : memref<16x16xf32, #tpu.memory_space<vmem>>, vector<16x16xf32>
    tpu.vector_store %arg10[%c0_5, %c0_6], %5 {strides = array<i32>} : memref<16x16xf32, #tpu.memory_space<vmem>>, vector<16x16xf32>,
    %c0_7 = arith.constant 0 : index
    %c0_8 = arith.constant 0 : index
    %7 = vector.load %arg2[%c0_7, %c0_8] : memref<16x32xf32, #tpu.memory_space<vmem>>, vector<16x32xf32>
    %c0_9 = arith.constant 0 : index
    %c0_10 = arith.constant 0 : index
    %8 = vector.load %arg6[%c0_9, %c0_10] : memref<32x16xf32, #tpu.memory_space<vmem>>, vector<32x16xf32>
    %cst_11 = arith.constant dense<0.000000e+00> : vector<16x16xf32>
    %9 = tpu.matmul %7, %8, %cst_11 {dimension_numbers = #tpu.dot_dimension_numbers<[1], [0], [0], [1], [0, 0, 1, 1], [], []>} : vector<16x32xf32>, vector<32x16xf32>, vector<16x16xf32> -> vector<16x16xf32>
    %c0_12 = arith.constant 0 : index
    %c0_13 = arith.constant 0 : index
    %10 = vector.load %arg7[%c0_12, %c0_13] : memref<1x16xf32, #tpu.memory_space<vmem>>, vector<1x16xf32>
    %11 = vector.broadcast %10 : vector<1x16xf32> to vector<16x16xf32>
    %12 = arith.addf %9, %11 : vector<16x16xf32>
    %c0_14 = arith.constant 0 : index
    %c0_15 = arith.constant 0 : index
    %13 = vector.load %arg11[%c0_14, %c0_15] : memref<16x16xf32, #tpu.memory_space<vmem>>, vector<16x16xf32>
    tpu.vector_store %arg11[%c0_14, %c0_15], %12 {strides = array<i32>} : memref<16x16xf32, #tpu.memory_space<vmem>>, vector<16x16xf32>,
    %c0_16 = arith.constant 0 : index
    %c0_17 = arith.constant 0 : index
    %14 = vector.load %arg3[%c0_16, %c0_17] : memref<16x32xf32, #tpu.memory_space<vmem>>, vector<16x32xf32>
    %c0_18 = arith.constant 0 : index
    %c0_19 = arith.constant 0 : index
    %15 = vector.load %arg8[%c0_18, %c0_19] : memref<32x16xf32, #tpu.memory_space<vmem>>, vector<32x16xf32>
    %cst_20 = arith.constant dense<0.000000e+00> : vector<16x16xf32>
    %16 = tpu.matmul %14, %15, %cst_20 {dimension_numbers = #tpu.dot_dimension_numbers<[1], [0], [0], [1], [0, 0, 1, 1], [], []>} : vector<16x32xf32>, vector<32x16xf32>, vector<16x16xf32> -> vector<16x16xf32>
    %c0_21 = arith.constant 0 : index
    %c0_22 = arith.constant 0 : index
    %17 = vector.load %arg9[%c0_21, %c0_22] : memref<1x16xf32, #tpu.memory_space<vmem>>, vector<1x16xf32>
    %18 = vector.broadcast %17 : vector<1x16xf32> to vector<16x16xf32>
    %19 = arith.addf %16, %18 : vector<16x16xf32>
    %c0_23 = arith.constant 0 : index
    %c0_24 = arith.constant 0 : index
    %20 = vector.load %arg12[%c0_23, %c0_24] : memref<16x16xf32, #tpu.memory_space<vmem>>, vector<16x16xf32>
    tpu.vector_store %arg12[%c0_23, %c0_24], %19 {strides = array<i32>} : memref<16x16xf32, #tpu.memory_space<vmem>>, vector<16x16xf32>,
    return
  }
  func.func @transform_0(%arg0: i32) -> (i32, i32) {
    %c0_i32 = arith.constant 0 : i32
    %c0_i32_0 = arith.constant 0 : i32
    return %arg0, %c0_i32 : i32, i32
  }
  func.func @transform_1(%arg0: i32) -> (i32, i32) {
    %c0_i32 = arith.constant 0 : i32
    %c0_i32_0 = arith.constant 0 : i32
    return %arg0, %c0_i32 : i32, i32
  }
  func.func @transform_2(%arg0: i32) -> (i32, i32) {
    %c0_i32 = arith.constant 0 : i32
    %c0_i32_0 = arith.constant 0 : i32
    return %arg0, %c0_i32 : i32, i32
  }
  func.func @transform_3(%arg0: i32) -> (i32, i32) {
    %c0_i32 = arith.constant 0 : i32
    %c0_i32_0 = arith.constant 0 : i32
    %c0_i32_1 = arith.constant 0 : i32
    return %c0_i32, %c0_i32_0 : i32, i32
  }
  func.func @transform_4(%arg0: i32) -> (i32, i32) {
    %c0_i32 = arith.constant 0 : i32
    %c0_i32_0 = arith.constant 0 : i32
    %c0_i32_1 = arith.constant 0 : i32
    return %c0_i32, %c0_i32_0 : i32, i32
  }
  func.func @transform_5(%arg0: i32) -> (i32, i32) {
    %c0_i32 = arith.constant 0 : i32
    %c0_i32_0 = arith.constant 0 : i32
    %c0_i32_1 = arith.constant 0 : i32
    return %c0_i32, %c0_i32_0 : i32, i32
  }
  func.func @transform_6(%arg0: i32) -> (i32, i32) {
    %c0_i32 = arith.constant 0 : i32
    %c0_i32_0 = arith.constant 0 : i32
    %c0_i32_1 = arith.constant 0 : i32
    return %c0_i32, %c0_i32_0 : i32, i32
  }
  func.func @transform_7(%arg0: i32) -> (i32, i32) {
    %c0_i32 = arith.constant 0 : i32
    %c0_i32_0 = arith.constant 0 : i32
    %c0_i32_1 = arith.constant 0 : i32
    return %c0_i32, %c0_i32_0 : i32, i32
  }
  func.func @transform_8(%arg0: i32) -> (i32, i32) {
    %c0_i32 = arith.constant 0 : i32
    %c0_i32_0 = arith.constant 0 : i32
    %c0_i32_1 = arith.constant 0 : i32
    return %c0_i32, %c0_i32_0 : i32, i32
  }
  func.func @transform_9(%arg0: i32) -> (i32, i32) {
    %c0_i32 = arith.constant 0 : i32
    %c0_i32_0 = arith.constant 0 : i32
    return %arg0, %c0_i32 : i32, i32
  }
  func.func @transform_10(%arg0: i32) -> (i32, i32) {
    %c0_i32 = arith.constant 0 : i32
    %c0_i32_0 = arith.constant 0 : i32
    return %arg0, %c0_i32 : i32, i32
  }
  func.func @transform_11(%arg0: i32) -> (i32, i32) {
    %c0_i32 = arith.constant 0 : i32
    %c0_i32_0 = arith.constant 0 : i32
    return %arg0, %c0_i32 : i32, i32
  }
}

</mosaic_0001>

<llo_original>
// kernel: tpu_custom_call.1
$region0: #{tpu_custom_call.1}
  #allocation0 [shape = 'u32[]', space=smem, size = 0x4, offset = 0x4, fixed_abs, tag = 'smem constant byte address 0x4 - core index']
  #allocation1 [shape = 'u32[144,128]{1,0:T(1,128)}', space=vmem, size = 0x12000, scoped, tag = 'internal scratch']
  %s0 = inlined_call_operand.vmem [shape: f32[16,32], index: 0, kind: input, shape index: {}]
  %s1 = inlined_call_operand.vmem [shape: f32[16,32], index: 1, kind: input, shape index: {}]
  %s2 = inlined_call_operand.vmem [shape: f32[16,32], index: 2, kind: input, shape index: {}]
  %s3 = inlined_call_operand.vmem [shape: f32[32,16], index: 3, kind: input, shape index: {}]
  %s4 = inlined_call_operand.vmem [shape: f32[1,16], index: 4, kind: input, shape index: {}]
  %s5 = inlined_call_operand.vmem [shape: f32[32,16], index: 5, kind: input, shape index: {}]
  %s6 = inlined_call_operand.vmem [shape: f32[1,16], index: 6, kind: input, shape index: {}]
  %s7 = inlined_call_operand.vmem [shape: f32[32,16], index: 7, kind: input, shape index: {}]
  %s8 = inlined_call_operand.vmem [shape: f32[1,16], index: 8, kind: input, shape index: {}]
  %s9 = inlined_call_operand.hbm [shape: f32[16,16], index: 9, kind: output, shape index: {0}]
  %s10 = inlined_call_operand.hbm [shape: f32[16,16], index: 10, kind: output, shape index: {1}]
  %s11 = inlined_call_operand.hbm [shape: f32[16,16], index: 11, kind: output, shape index: {2}]
  %12 = xla_tuple %s9, %s10, %s11
  %s13 = sld [smem:[#allocation0]]
  $region62: #{tpu_custom_call.1} parent=0
    _
  %s15 = ssub.s32 1, %s13
  %s16 = scalar_select 0, %s15, %s13
  $region1: #{tpu_custom_call.1} parent=0
    #allocation2 [shape = 'u8[8192]{0}', space=vmem, size = 0x2000, scoped, tag = 'output window, operand 0, single buffered']
    #allocation3 [shape = 's32[1]{0}', space=sflag, size = 0x4, scoped, tag = 'scoped memory for tpu_custom_call.1']
    #allocation4 [shape = 'u8[8192]{0}', space=vmem, size = 0x2000, scoped, tag = 'output window, operand 1, single buffered']
    #allocation5 [shape = 's32[1]{0}', space=sflag, size = 0x4, scoped, tag = 'scoped memory for tpu_custom_call.1']
    #allocation6 [shape = 'u8[8192]{0}', space=vmem, size = 0x2000, scoped, tag = 'output window, operand 2, single buffered']
    %17 = vsyncpa [#allocation3], 0
    %18 = vsyncpa [#allocation5], 0
    // Predicated region
    $region2: #{tpu_custom_call.1} parent=1 // pred_check
      _
    $region3: #{tpu_custom_call.1} parent=1 // pred_check_branch
      %20 = sbr.rel (0) target = $region5
    $region4: #{tpu_custom_call.1} parent=1 // pred_region
      _
    $region5: #{tpu_custom_call.1} parent=1 // pred_fallthru
      _
    // Predicated region
    $region6: #{tpu_custom_call.1} parent=1 // pred_check
      _
    $region7: #{tpu_custom_call.1} parent=1 // pred_check_branch
      %22 = sbr.rel (0) target = $region9
    $region8: #{tpu_custom_call.1} parent=1 // pred_region
      _
    $region9: #{tpu_custom_call.1} parent=1 // pred_fallthru
      _
    // Predicated region
    $region10: #{tpu_custom_call.1} parent=1 // pred_check
      _
    $region11: #{tpu_custom_call.1} parent=1 // pred_check_branch
      %24 = sbr.rel (0) target = $region13
    $region12: #{tpu_custom_call.1} parent=1 // pred_region
      _
    $region13: #{tpu_custom_call.1} parent=1 // pred_fallthru
      _
    // Predicated region
    $region14: #{tpu_custom_call.1} parent=1 // pred_check
      _
    $region15: #{tpu_custom_call.1} parent=1 // pred_check_branch
      %26 = sbr.rel (0) target = $region17
    $region16: #{tpu_custom_call.1} parent=1 // pred_region
      _
    $region17: #{tpu_custom_call.1} parent=1 // pred_fallthru
      _
    // Predicated region
    $region18: #{tpu_custom_call.1} parent=1 // pred_check
      _
    $region19: #{tpu_custom_call.1} parent=1 // pred_check_branch
      %28 = sbr.rel (0) target = $region21
    $region20: #{tpu_custom_call.1} parent=1 // pred_region
      _
    $region21: #{tpu_custom_call.1} parent=1 // pred_fallthru
      _
    // Predicated region
    $region22: #{tpu_custom_call.1} parent=1 // pred_check
      _
    $region23: #{tpu_custom_call.1} parent=1 // pred_check_branch
      %30 = sbr.rel (0) target = $region25
    $region24: #{tpu_custom_call.1} parent=1 // pred_region
      _
    $region25: #{tpu_custom_call.1} parent=1 // pred_fallthru
      _
    // Predicated region
    $region26: #{tpu_custom_call.1} parent=1 // pred_check
      _
    $region27: #{tpu_custom_call.1} parent=1 // pred_check_branch
      %32 = sbr.rel (0) target = $region29
    $region28: #{tpu_custom_call.1} parent=1 // pred_region
      _
    $region29: #{tpu_custom_call.1} parent=1 // pred_fallthru
      _
    // Predicated region
    $region30: #{tpu_custom_call.1} parent=1 // pred_check
      _
    $region31: #{tpu_custom_call.1} parent=1 // pred_check_branch
      %34 = sbr.rel (0) target = $region33
    $region32: #{tpu_custom_call.1} parent=1 // pred_region
      _
    $region33: #{tpu_custom_call.1} parent=1 // pred_fallthru
      _
    // Predicated region
    $region34: #{tpu_custom_call.1} parent=1 // pred_check
      _
    $region35: #{tpu_custom_call.1} parent=1 // pred_check_branch
      %36 = sbr.rel (0) target = $region37
    $region36: #{tpu_custom_call.1} parent=1 // pred_region
      _
    $region37: #{tpu_custom_call.1} parent=1 // pred_fallthru
      _
    %v37 = vld [vmem:[%s0] sm:$0xff]
    %v38 = vld [vmem:[%s0 + $0x8] sm:$0xff]
    %v39 = vld [vmem:[%s3] sm:$0xff]
    %v40 = vld [vmem:[%s3 + $0x8] sm:$0xff]
    %v41 = vld [vmem:[%s3 + $0x10] sm:$0xff]
    %v42 = vld [vmem:[%s3 + $0x18] sm:$0xff]
    %v43 = vld [vmem:[%s4] sm:$0x1]
    %v45 = vlaneseq
    %v46 = vshrl.u32 %v45, 7
    %v47 = vsub.s32 0, %v46
    %v48 = vrot.slane %v43, %v47
    %vm50 = vcmask 261120
    %v52 = vsel %vm50, %v37, 0
    %v55 = vsel %vm50, %v38, 0
    %57 = vmatprep.subr.mxu0 0.0
    %58 = vmatpush1.msra.mxu0 %v39
    %59 = vmatprep.subr.mxu0 0.0
    %60 = vmatpush1.msra.mxu0 %v40
    %61 = vmatprep.subr.mxu0 0.0
    %62 = vmatpush1.msra.mxu0 %v41
    %63 = vmatprep.subr.mxu0 0.0
    %64 = vmatpush1.msra.mxu0 %v42
    %65 = vmatprep.subr.mxu0 0.0
    %66 = vmatpush1.msra.mxu0 0.0
    %67 = vmatprep.subr.mxu0 0.0
    %68 = vmatpush1.msra.mxu0 0.0
    %69 = vmatprep.subr.mxu0 0.0
    %70 = vmatpush1.msra.mxu0 0.0
    %71 = vmatprep.subr.mxu0 0.0
    %72 = vmatpush1.msra.mxu0 0.0
    %73 = vmatprep.subr.mxu0 0.0
    %74 = vmatpush1.msra.mxu0 0.0
    %75 = vmatprep.subr.mxu0 0.0
    %76 = vmatpush1.msra.mxu0 0.0
    %77 = vmatprep.subr.mxu0 0.0
    %78 = vmatpush1.msra.mxu0 0.0
    %79 = vmatprep.subr.mxu0 0.0
    %80 = vmatpush1.msra.mxu0 0.0
    %81 = vmatprep.subr.mxu0 0.0
    %82 = vmatpush1.msra.mxu0 0.0
    %83 = vmatprep.subr.mxu0 0.0
    %84 = vmatpush1.msra.mxu0 0.0
    %85 = vmatprep.subr.mxu0 0.0
    %86 = vmatpush1.msra.mxu0 0.0
    %87 = vmatprep.subr.mxu0 0.0
    %88 = vmatpush1.msra.mxu0 0.0
    %89 = vmatprep.subr.mxu0 0.0
    %90 = vmatpush1.msra.mxu0 0.0
    %91 = vmatprep.subr.mxu0 0.0
    %92 = vmatpush1.msra.mxu0 0.0
    %93 = vmatprep.subr.mxu0 0.0
    %94 = vmatpush1.msra.mxu0 0.0
    %95 = vmatprep.subr.mxu0 0.0
    %96 = vmatpush1.msra.mxu0 0.0
    %97 = vmatprep.subr.mxu0 0.0
    %98 = vmatpush1.msra.mxu0 0.0
    %99 = vmatprep.subr.mxu0 0.0
    %100 = vmatpush1.msra.mxu0 0.0
    %101 = vmatprep.subr.mxu0 0.0
    %102 = vmatpush1.msra.mxu0 0.0
    %103 = vmatprep.subr.mxu0 0.0
    %104 = vmatpush1.msra.mxu0 0.0
    %105 = vmatprep.subr.mxu0 0.0
    %106 = vmatpush1.msra.mxu0 0.0
    %107 = vmatprep.subr.mxu0 0.0
    %108 = vmatpush1.msra.mxu0 0.0
    %109 = vmatprep.subr.mxu0 0.0
    %110 = vmatpush1.msra.mxu0 0.0
    %111 = vmatprep.subr.mxu0 0.0
    %112 = vmatpush1.msra.mxu0 0.0
    %113 = vmatprep.subr.mxu0 0.0
    %114 = vmatpush1.msra.mxu0 0.0
    %115 = vmatprep.subr.mxu0 0.0
    %116 = vmatpush1.msra.mxu0 0.0
    %117 = vmatprep.subr.mxu0 0.0
    %118 = vmatpush1.msra.mxu0 0.0
    %119 = vmatprep.subr.mxu0 0.0
    %120 = vmatpush1.msra.mxu0 0.0
    %121 = vmatprep.mubr.f32.mxu0 0.0
    %122 = vmatmul.mubr.f32.gmra.mrb[0].mxu0 %v52
    %v123 = vpop.f32.mrb[0].mxu0
    %v124 = vadd.f32 %v48, %v123
    %v125 = vpop.f32.mrb[0].mxu0
    %126 = vmatprep.mubr.f32.mxu0 0.0
    %127 = vmatmul.mubr.f32.gmra.mrb[0].mxu0 %v55
    %v128 = vpop.f32.mrb[0].mxu0
    %v129 = vadd.f32 %v48, %v128
    %v130 = vpop.f32.mrb[0].mxu0
    %131 = vdwg.mxu0
    %vm132 = vcmask 130048
    %133 = vst.msk [vmem:[#allocation2] sm:$0xff] %vm132, %v124
    %134 = vst.msk [vmem:[#allocation2 + $0x8] sm:$0xff] %vm132, %v129
    %v135 = vld [vmem:[%s1] sm:$0xff]
    %v136 = vld [vmem:[%s1 + $0x8] sm:$0xff]
    %v137 = vld [vmem:[%s5] sm:$0xff]
    %v138 = vld [vmem:[%s5 + $0x8] sm:$0xff]
    %v139 = vld [vmem:[%s5 + $0x10] sm:$0xff]
    %v140 = vld [vmem:[%s5 + $0x18] sm:$0xff]
    %v141 = vld [vmem:[%s6] sm:$0x1]
    %v143 = vlaneseq
    %v144 = vshrl.u32 %v143, 7
    %v145 = vsub.s32 0, %v144
    %v146 = vrot.slane %v141, %v145
    %v149 = vsel %vm50, %v135, 0
    %v152 = vsel %vm50, %v136, 0
    %154 = vmatprep.subr.mxu0 0.0
    %155 = vmatpush1.msra.mxu0 %v137
    %156 = vmatprep.subr.mxu0 0.0
    %157 = vmatpush1.msra.mxu0 %v138
    %158 = vmatprep.subr.mxu0 0.0
    %159 = vmatpush1.msra.mxu0 %v139
    %160 = vmatprep.subr.mxu0 0.0
    %161 = vmatpush1.msra.mxu0 %v140
    %162 = vmatprep.subr.mxu0 0.0
    %163 = vmatpush1.msra.mxu0 0.0
    %164 = vmatprep.subr.mxu0 0.0
    %165 = vmatpush1.msra.mxu0 0.0
    %166 = vmatprep.subr.mxu0 0.0
    %167 = vmatpush1.msra.mxu0 0.0
    %168 = vmatprep.subr.mxu0 0.0
    %169 = vmatpush1.msra.mxu0 0.0
    %170 = vmatprep.subr.mxu0 0.0
    %171 = vmatpush1.msra.mxu0 0.0
    %172 = vmatprep.subr.mxu0 0.0
    %173 = vmatpush1.msra.mxu0 0.0
    %174 = vmatprep.subr.mxu0 0.0
    %175 = vmatpush1.msra.mxu0 0.0
    %176 = vmatprep.subr.mxu0 0.0
    %177 = vmatpush1.msra.mxu0 0.0
    %178 = vmatprep.subr.mxu0 0.0
    %179 = vmatpush1.msra.mxu0 0.0
    %180 = vmatprep.subr.mxu0 0.0
    %181 = vmatpush1.msra.mxu0 0.0
    %182 = vmatprep.subr.mxu0 0.0
    %183 = vmatpush1.msra.mxu0 0.0
    %184 = vmatprep.subr.mxu0 0.0
    %185 = vmatpush1.msra.mxu0 0.0
    %186 = vmatprep.subr.mxu0 0.0
    %187 = vmatpush1.msra.mxu0 0.0
    %188 = vmatprep.subr.mxu0 0.0
    %189 = vmatpush1.msra.mxu0 0.0
    %190 = vmatprep.subr.mxu0 0.0
    %191 = vmatpush1.msra.mxu0 0.0
    %192 = vmatprep.subr.mxu0 0.0
    %193 = vmatpush1.msra.mxu0 0.0
    %194 = vmatprep.subr.mxu0 0.0
    %195 = vmatpush1.msra.mxu0 0.0
    %196 = vmatprep.subr.mxu0 0.0
    %197 = vmatpush1.msra.mxu0 0.0
    %198 = vmatprep.subr.mxu0 0.0
    %199 = vmatpush1.msra.mxu0 0.0
    %200 = vmatprep.subr.mxu0 0.0
    %201 = vmatpush1.msra.mxu0 0.0
    %202 = vmatprep.subr.mxu0 0.0
    %203 = vmatpush1.msra.mxu0 0.0
    %204 = vmatprep.subr.mxu0 0.0
    %205 = vmatpush1.msra.mxu0 0.0
    %206 = vmatprep.subr.mxu0 0.0
    %207 = vmatpush1.msra.mxu0 0.0
    %208 = vmatprep.subr.mxu0 0.0
    %209 = vmatpush1.msra.mxu0 0.0
    %210 = vmatprep.subr.mxu0 0.0
    %211 = vmatpush1.msra.mxu0 0.0
    %212 = vmatprep.subr.mxu0 0.0
    %213 = vmatpush1.msra.mxu0 0.0
    %214 = vmatprep.subr.mxu0 0.0
    %215 = vmatpush1.msra.mxu0 0.0
    %216 = vmatprep.subr.mxu0 0.0
    %217 = vmatpush1.msra.mxu0 0.0
    %218 = vmatprep.mubr.f32.mxu0 0.0
    %219 = vmatmul.mubr.f32.gmra.mrb[0].mxu0 %v149
    %v220 = vpop.f32.mrb[0].mxu0
    %v221 = vadd.f32 %v146, %v220
    %v222 = vpop.f32.mrb[0].mxu0
    %223 = vmatprep.mubr.f32.mxu0 0.0
    %224 = vmatmul.mubr.f32.gmra.mrb[0].mxu0 %v152
    %v225 = vpop.f32.mrb[0].mxu0
    %v226 = vadd.f32 %v146, %v225
    %v227 = vpop.f32.mrb[0].mxu0
    %228 = vdwg.mxu0
    %229 = vst.msk [vmem:[#allocation4] sm:$0xff] %vm132, %v221
    %230 = vst.msk [vmem:[#allocation4 + $0x8] sm:$0xff] %vm132, %v226
    %v231 = vld [vmem:[%s2] sm:$0xff]
    %v232 = vld [vmem:[%s2 + $0x8] sm:$0xff]
    %v233 = vld [vmem:[%s7] sm:$0xff]
    %v234 = vld [vmem:[%s7 + $0x8] sm:$0xff]
    %v235 = vld [vmem:[%s7 + $0x10] sm:$0xff]
    %v236 = vld [vmem:[%s7 + $0x18] sm:$0xff]
    %v237 = vld [vmem:[%s8] sm:$0x1]
    %v239 = vlaneseq
    %v240 = vshrl.u32 %v239, 7
    %v241 = vsub.s32 0, %v240
    %v242 = vrot.slane %v237, %v241
    %v245 = vsel %vm50, %v231, 0
    %v248 = vsel %vm50, %v232, 0
    %250 = vmatprep.subr.mxu0 0.0
    %251 = vmatpush1.msra.mxu0 %v233
    %252 = vmatprep.subr.mxu0 0.0
    %253 = vmatpush1.msra.mxu0 %v234
    %254 = vmatprep.subr.mxu0 0.0
    %255 = vmatpush1.msra.mxu0 %v235
    %256 = vmatprep.subr.mxu0 0.0
    %257 = vmatpush1.msra.mxu0 %v236
    %258 = vmatprep.subr.mxu0 0.0
    %259 = vmatpush1.msra.mxu0 0.0
    %260 = vmatprep.subr.mxu0 0.0
    %261 = vmatpush1.msra.mxu0 0.0
    %262 = vmatprep.subr.mxu0 0.0
    %263 = vmatpush1.msra.mxu0 0.0
    %264 = vmatprep.subr.mxu0 0.0
    %265 = vmatpush1.msra.mxu0 0.0
    %266 = vmatprep.subr.mxu0 0.0
    %267 = vmatpush1.msra.mxu0 0.0
    %268 = vmatprep.subr.mxu0 0.0
    %269 = vmatpush1.msra.mxu0 0.0
    %270 = vmatprep.subr.mxu0 0.0
    %271 = vmatpush1.msra.mxu0 0.0
    %272 = vmatprep.subr.mxu0 0.0
    %273 = vmatpush1.msra.mxu0 0.0
    %274 = vmatprep.subr.mxu0 0.0
    %275 = vmatpush1.msra.mxu0 0.0
    %276 = vmatprep.subr.mxu0 0.0
    %277 = vmatpush1.msra.mxu0 0.0
    %278 = vmatprep.subr.mxu0 0.0
    %279 = vmatpush1.msra.mxu0 0.0
    %280 = vmatprep.subr.mxu0 0.0
    %281 = vmatpush1.msra.mxu0 0.0
    %282 = vmatprep.subr.mxu0 0.0
    %283 = vmatpush1.msra.mxu0 0.0
    %284 = vmatprep.subr.mxu0 0.0
    %285 = vmatpush1.msra.mxu0 0.0
    %286 = vmatprep.subr.mxu0 0.0
    %287 = vmatpush1.msra.mxu0 0.0
    %288 = vmatprep.subr.mxu0 0.0
    %289 = vmatpush1.msra.mxu0 0.0
    %290 = vmatprep.subr.mxu0 0.0
    %291 = vmatpush1.msra.mxu0 0.0
    %292 = vmatprep.subr.mxu0 0.0
    %293 = vmatpush1.msra.mxu0 0.0
    %294 = vmatprep.subr.mxu0 0.0
    %295 = vmatpush1.msra.mxu0 0.0
    %296 = vmatprep.subr.mxu0 0.0
    %297 = vmatpush1.msra.mxu0 0.0
    %298 = vmatprep.subr.mxu0 0.0
    %299 = vmatpush1.msra.mxu0 0.0
    %300 = vmatprep.subr.mxu0 0.0
    %301 = vmatpush1.msra.mxu0 0.0
    %302 = vmatprep.subr.mxu0 0.0
    %303 = vmatpush1.msra.mxu0 0.0
    %304 = vmatprep.subr.mxu0 0.0
    %305 = vmatpush1.msra.mxu0 0.0
    %306 = vmatprep.subr.mxu0 0.0
    %307 = vmatpush1.msra.mxu0 0.0
    %308 = vmatprep.subr.mxu0 0.0
    %309 = vmatpush1.msra.mxu0 0.0
    %310 = vmatprep.subr.mxu0 0.0
    %311 = vmatpush1.msra.mxu0 0.0
    %312 = vmatprep.subr.mxu0 0.0
    %313 = vmatpush1.msra.mxu0 0.0
    %314 = vmatprep.mubr.f32.mxu0 0.0
    %315 = vmatmul.mubr.f32.gmra.mrb[0].mxu0 %v245
    %v316 = vpop.f32.mrb[0].mxu0
    %v317 = vadd.f32 %v242, %v316
    %v318 = vpop.f32.mrb[0].mxu0
    %319 = vmatprep.mubr.f32.mxu0 0.0
    %320 = vmatmul.mubr.f32.gmra.mrb[0].mxu0 %v248
    %v321 = vpop.f32.mrb[0].mxu0
    %v322 = vadd.f32 %v242, %v321
    %v323 = vpop.f32.mrb[0].mxu0
    %324 = vdwg.mxu0
    %325 = vst.msk [vmem:[#allocation6] sm:$0xff] %vm132, %v317
    %326 = vst.msk [vmem:[#allocation6 + $0x8] sm:$0xff] %vm132, %v322
    // Predicated region
    $region38: #{tpu_custom_call.1} parent=1 // pred_check
      _
    $region39: #{tpu_custom_call.1} parent=1 // pred_check_branch
      %328 = sbr.rel (0) target = $region41
    $region40: #{tpu_custom_call.1} parent=1 // pred_region
      %s330 = ssub.s32 256, 256
      %331 = vsyncadd [#allocation3], %s330
      %s332 = sshll.u32 [#allocation2], 4
      %s333 = int_to_ptr.vmem [resolvable:$true] %s332
      %338 = dma.vmem_to_hbm [thread:$0]  %s333, 256, %s9, [#allocation3], 128, 128, 8
    $region41: #{tpu_custom_call.1} parent=1 // pred_fallthru
      _
    // Predicated region
    $region42: #{tpu_custom_call.1} parent=1 // pred_check
      _
    $region43: #{tpu_custom_call.1} parent=1 // pred_check_branch
      %340 = sbr.rel (0) target = $region45
    $region44: #{tpu_custom_call.1} parent=1 // pred_region
      %s342 = ssub.s32 256, 256
      %343 = vsyncadd [#allocation5], %s342
      %s344 = sshll.u32 [#allocation4], 4
      %s345 = int_to_ptr.vmem [resolvable:$true] %s344
      %350 = dma.vmem_to_hbm [thread:$0]  %s345, 256, %s10, [#allocation5], 128, 128, 8
    $region45: #{tpu_custom_call.1} parent=1 // pred_fallthru
      _
    // Predicated region
    $region46: #{tpu_custom_call.1} parent=1 // pred_check
      _
    $region47: #{tpu_custom_call.1} parent=1 // pred_check_branch
      %352 = sbr.rel (0) target = $region49
    $region48: #{tpu_custom_call.1} parent=1 // pred_region
      %s354 = ssub.s32 256, 256
      %355 = vsyncadd [#allocation5], %s354
      %s356 = sshll.u32 [#allocation6], 4
      %s357 = int_to_ptr.vmem [resolvable:$true] %s356
      %362 = dma.vmem_to_hbm [thread:$0]  %s357, 256, %s11, [#allocation5], 128, 128, 8
    $region49: #{tpu_custom_call.1} parent=1 // pred_fallthru
      _
    // Predicated region
    $region50: #{tpu_custom_call.1} parent=1 // pred_check
      _
    $region51: #{tpu_custom_call.1} parent=1 // pred_check_branch
      %364 = sbr.rel (0) target = $region53
    $region52: #{tpu_custom_call.1} parent=1 // pred_region
      %365 = dma.done [#allocation3], 256
    $region53: #{tpu_custom_call.1} parent=1 // pred_fallthru
      _
    // Predicated region
    $region54: #{tpu_custom_call.1} parent=1 // pred_check
      _
    $region55: #{tpu_custom_call.1} parent=1 // pred_check_branch
      %367 = sbr.rel (0) target = $region57
    $region56: #{tpu_custom_call.1} parent=1 // pred_region
      %368 = dma.done [#allocation5], 256
    $region57: #{tpu_custom_call.1} parent=1 // pred_fallthru
      _
    // Predicated region
    $region58: #{tpu_custom_call.1} parent=1 // pred_check
      _
    $region59: #{tpu_custom_call.1} parent=1 // pred_check_branch
      %370 = sbr.rel (0) target = $region61
    $region60: #{tpu_custom_call.1} parent=1 // pred_region
      %371 = dma.done [#allocation5], 256
    $region61: #{tpu_custom_call.1} parent=1 // pred_fallthru
      _
    %372 = vsyncpa [#allocation3], 1
    %373 = vsyncpa [#allocation5], 1

</llo_original>
